<compile_context>
chip_gen: v6e
topology: v6e:2x2x1
jax: 0.10.0
libtpu: 0.0.40
codegen_flags: <defaults>
</compile_context>

<pallas_src>
import functools
from typing import NamedTuple

import jax
import jax.numpy as jnp
from jax.experimental import pallas as pl
from jax.experimental.pallas import tpu as pltpu

_LANE = 128


def _round_up(x, m):
    return ((x + m - 1) // m) * m


def _vmem_capacity_bytes():
    """Physical VMEM per TensorCore; conservative fallback if the query fails."""
    try:
        return int(pltpu.get_tpu_info().vmem_capacity_bytes)
    except Exception:
        return 64 << 20  # v7x has the smallest per-core VMEM


def _resident_bytes(batch, dim, itemsize):
    """VMEM held regardless of bank-tile size (xn, LSE output, scratch)."""
    b_pad = _round_up(max(int(batch), 1), 16)
    d_pad = _round_up(max(int(dim), 1), _LANE)
    xn = 2 * b_pad * d_pad * itemsize        # resident input (double-buffered)
    out = 2 * b_pad * _LANE * 4              # (1, B, 128) f32 output block
    scratch = 2 * b_pad * _LANE * 4          # m / s scratch, lane-padded
    return xn + out + scratch


class PreparedBank(NamedTuple):
    """Memory bank pre-processed once per bank update (not per loss call)."""
    feat_kmajor: jax.Array      # (2, D, C_pad) compute_dtype, zero-padded tail
    features: jax.Array         # original (2C, D) bank (picked-logit gather)
    num_clusters: int           # C
    tile_c: int
    compute_dtype: object
    usable_vmem: int


def prepare_cluster_bank(features, *, compute_dtype=jnp.bfloat16,
                         tile_c=None, max_batch_hint=512, feature_buffers=2):
    """Cast / per-half transpose / pad the memory bank once.

    Call whenever the bank is (re)built; the loss wrapper then streams it
    without re-materializing the full bank in HBM on every call.
    """
    twoC, D = features.shape
    assert twoC % 2 == 0, "bank must hold mean+hard prototypes (2C rows)"
    C = twoC // 2
    compute_dtype = jnp.dtype(compute_dtype)
    itemsize = compute_dtype.itemsize

    vmem_cap = _vmem_capacity_bytes()
    usable = min(int(vmem_cap * 0.8), 100 << 20)   # ~51 MiB v7x, ~100 v5e/v6e

    if tile_c is None:
        margin = 2 << 20
        budget = usable - _resident_bytes(max_batch_hint, D, itemsize) - margin
        budget = max(budget, 1 << 20)
        # Target multi-MiB DMAs per bank slab to amortize per-grid-step cost.
        target = 4 << 20
        tc = (target // max(D * itemsize, 1)) // _LANE * _LANE
        tc_vmem = (budget // (feature_buffers * D * itemsize)) // _LANE * _LANE
        tile_c = int(max(min(tc, tc_vmem, _round_up(C, _LANE)), _LANE))
    else:
        tile_c = int(max((int(tile_c) // _LANE) * _LANE, _LANE))
        tile_c = min(tile_c, _round_up(C, _LANE))

    c_pad = _round_up(C, tile_c)

    halves = features.astype(compute_dtype).reshape(2, C, D)
    feat_kmajor = jnp.transpose(halves, (0, 2, 1))          # (2, D, C)
    if c_pad != C:
        feat_kmajor = jnp.pad(feat_kmajor, ((0, 0), (0, 0), (0, c_pad - C)))

    return PreparedBank(feat_kmajor=feat_kmajor, features=features,
                        num_clusters=C, tile_c=tile_c,
                        compute_dtype=compute_dtype, usable_vmem=usable)


def _half_lse_kernel(xn_ref, feat_ref, lse_ref, m_ref, s_ref, *,
                     inv_temp, num_valid):
    """One (half, tile) step: a single K-major MXU pass over a (D, TILE_C)
    bank slab plus an online-logsumexp update of the per-row running stats."""
    c = pl.program_id(1)
    n_c = pl.num_programs(1)
    B = xn_ref.shape[0]
    tile_c = feat_ref.shape[-1]

    @pl.when(c == 0)
    def _init():
        # Large-finite (not -inf) init keeps every exp() argument finite.
        m_ref[...] = jnp.full(m_ref.shape, -1e30, jnp.float32)
        s_ref[...] = jnp.zeros_like(s_ref)

    # Single MXU pass, f32 accumulation.
    logits = jnp.dot(xn_ref[...], feat_ref[0],
                     preferred_element_type=jnp.float32) * inv_temp

    if num_valid is not None:
        # Static-only branch: the prototype axis was zero-padded in the
        # prepared bank, so exclude padded tail columns from the softmax.
        col = jax.lax.broadcasted_iota(jnp.int32, (B, tile_c), 1) + c * tile_c
        logits = jnp.where(col < num_valid, logits, -1e30)

    m_old = m_ref[...]                                        # (B, 1)
    m_new = jnp.maximum(m_old, jnp.max(logits, axis=1, keepdims=True))
    s_ref[...] = s_ref[...] * jnp.exp(m_old - m_new) + jnp.sum(
        jnp.exp(logits - m_new), axis=1, keepdims=True)
    m_ref[...] = m_new

    @pl.when(c == n_c - 1)
    def _finalize():
        lse = m_ref[...] + jnp.log(s_ref[...])                # (B, 1)
        # Lane-dense store (no masked single-lane writeback).
        lse_ref[0] = jnp.broadcast_to(lse, (B, _LANE))


def cluster_memory_amp_loss(inputs, targets, bank, *, temp=0.05,
                            compute_dtype=jnp.bfloat16, tile_c=None,
                            feature_buffers=None):
    """JAX/Pallas equivalent of ClusterMemoryAMP.forward (loss value only).

    `bank` is either a PreparedBank (preferred: prepare once per bank update)
    or the raw (2C, D) feature bank (prepared on the fly for convenience).
    """
    if not isinstance(bank, PreparedBank):
        bank = prepare_cluster_bank(bank, compute_dtype=compute_dtype,
                                    tile_c=tile_c,
                                    max_batch_hint=inputs.shape[0])

    B, D = inputs.shape
    C = bank.num_clusters
    tile_c = bank.tile_c
    cdt = jnp.dtype(bank.compute_dtype)
    itemsize = cdt.itemsize
    c_pad = bank.feat_kmajor.shape[-1]
    n_tiles = c_pad // tile_c
    assert bank.feat_kmajor.shape[1] == D, "feature dim mismatch"
    # TODO(synk): targets are assumed to be in [0, C) (same implicit contract
    #             as the PyTorch module); add a host-side check if needed.

    # Row L2-normalization (torch F.normalize semantics, eps=1e-12) once in
    # XLA; the kernel consumes the compute_dtype copy.
    x32 = inputs.astype(jnp.float32)
    norm = jnp.sqrt(jnp.sum(x32 * x32, axis=1, keepdims=True))
    xn32 = x32 / jnp.maximum(norm, 1e-12)
    xn = xn32.astype(cdt)

    # VMEM budget from actual buffer sizes (bank slab double-buffered by
    # default; grid-invariant xn is currently also double-buffered).
    n_feat_buf = 2 if feature_buffers is None else int(feature_buffers)
    feat_bytes = n_feat_buf * _round_up(D, 16) * tile_c * itemsize
    need = feat_bytes + _resident_bytes(B, D, itemsize) + (2 << 20)
    vmem_limit = int(min(max(need, 16 << 20), bank.usable_vmem))

    feat_spec_kwargs = {}
    if feature_buffers is not None and int(feature_buffers) != 2:
        # e.g. 3 on v5e to hide DMA jitter behind the slower HBM stream.
        feat_spec_kwargs["pipeline_mode"] = pl.Buffered(int(feature_buffers))

    kernel = functools.partial(
        _half_lse_kernel,
        inv_temp=float(1.0 / temp),
        num_valid=(C if c_pad != C else None))

    grid_spec = pltpu.PrefetchScalarGridSpec(
        num_scalar_prefetch=0,
        grid=(2, n_tiles),                            # (mean/hard half, tile)
        in_specs=[
            pl.BlockSpec((B, D), lambda h, c: (0, 0)),              # xn, resident
            pl.BlockSpec((1, D, tile_c), lambda h, c: (h, 0, c),    # bank slab
                         **feat_spec_kwargs),
        ],
        out_specs=pl.BlockSpec((1, B, _LANE), lambda h, c: (h, 0, 0)),
        scratch_shapes=[
            pltpu.VMEM((B, 1), jnp.float32),          # running max
            pltpu.VMEM((B, 1), jnp.float32),          # running sum-exp
        ])

    lse = pl.pallas_call(
        kernel,
        out_shape=jax.ShapeDtypeStruct((2, B, _LANE), jnp.float32),
        grid_spec=grid_spec,
        compiler_params=pltpu.CompilerParams(
            # Half axis: two independent partial reductions (v7x may split
            # them across TensorCores); tile axis: sequential reduction.
            dimension_semantics=("parallel", "arbitrary"),
            vmem_limit_bytes=vmem_limit),
    )(xn, bank.feat_kmajor)

    lse_mean = lse[0, :, 0]      # logsumexp over the "mean" prototypes
    lse_hard = lse[1, :, 0]      # logsumexp over the "hard" prototypes

    # Picked-target logits: tiny O(B*D) gather + rowwise dot in the wrapper
    # (keeps all target compares/selects out of the kernel hot loop).
    inv_temp = 1.0 / float(temp)
    tgt = targets.astype(jnp.int32)
    sel_mean = bank.features[tgt].astype(cdt).astype(jnp.float32)
    sel_hard = bank.features[tgt + C].astype(cdt).astype(jnp.float32)
    xn_f32 = xn.astype(jnp.float32)
    picked_mean = jnp.sum(xn_f32 * sel_mean, axis=1) * inv_temp
    picked_hard = jnp.sum(xn_f32 * sel_hard, axis=1) * inv_temp

    loss = 0.5 * (jnp.mean(lse_hard - picked_hard)
                  + jnp.mean(lse_mean - picked_mean))
    return loss


def _reference_loss(inputs, targets, features, temp,
                    compute_dtype=jnp.float32):
    """Pure-JAX re-implementation of the PyTorch forward (correctness check),
    optionally with the same AMP-style compute dtype as the kernel."""
    x32 = inputs.astype(jnp.float32)
    norm = jnp.sqrt(jnp.sum(x32 * x32, axis=1, keepdims=True))
    xn = x32 / jnp.maximum(norm, 1e-12)
    logits = jnp.dot(xn.astype(compute_dtype),
                     features.astype(compute_dtype).T,
                     preferred_element_type=jnp.float32,
                     precision=jax.lax.Precision.HIGHEST) / temp
    C = features.shape[0] // 2
    mean_l, hard_l = logits[:, :C], logits[:, C:]

    def ce(lg):
        lse = jax.nn.logsumexp(lg, axis=1)
        picked = lg[jnp.arange(lg.shape[0]), targets]
        return jnp.mean(lse - picked)

    return 0.5 * (ce(hard_l) + ce(mean_l))


def _make_data(key, B, D, C):
    k_in, k_feat, k_tgt = jax.random.split(key, 3)
    inputs = jax.random.normal(k_in, (B, D), dtype=jnp.float32)
    features = jax.random.normal(k_feat, (2 * C, D), dtype=jnp.float32)
    features = features / jnp.linalg.norm(features, axis=1, keepdims=True)
    targets = jax.random.randint(k_tgt, (B,), 0, C, dtype=jnp.int32)
    return inputs, targets, features


if __name__ == "__main__":
    temp = 0.05
    key = jax.random.PRNGKey(0)
    k1, k2 = jax.random.split(key)

    # Config 1: tiny shapes, single-tile path, f32 compute for a tight check
    # (B=8, D=128, C=8 -> bank (16, 128), each half padded to 128 columns).
    inputs, targets, features = _make_data(k1, B=8, D=128, C=8)
    bank = prepare_cluster_bank(features, compute_dtype=jnp.float32)
    loss = cluster_memory_amp_loss(inputs, targets, bank, temp=temp)
    loss = jax.block_until_ready(loss)
    ref = _reference_loss(inputs, targets, features, temp)
    assert jnp.allclose(loss, ref, rtol=5e-4, atol=5e-4), (loss, ref)

    # Config 2: multi-tile path exercising the (half, tile) grid, the online
    # LSE, the per-half zero-padded tail and the default bf16 bank streaming
    # (C=200 -> C_pad=256 with tile_c=128 -> 2 tiles per half).
    inputs2, targets2, features2 = _make_data(k2, B=16, D=256, C=200)
    bank2 = prepare_cluster_bank(features2, tile_c=128)      # default bf16
    loss2 = cluster_memory_amp_loss(inputs2, targets2, bank2, temp=temp)
    loss2 = jax.block_until_ready(loss2)
    ref2 = _reference_loss(inputs2, targets2, features2, temp,
                           compute_dtype=jnp.bfloat16)
    assert jnp.allclose(loss2, ref2, rtol=2e-3, atol=2e-3), (loss2, ref2)

    print("KERNEL_OK")
</pallas_src>

<mosaic_0001>
module attributes {stable_mosaic.version = 11 : i64} {
  func.func @_half_lse_kernel(%arg0: i32, %arg1: i32, %arg2: memref<8x128xf32, #tpu.memory_space<vmem>>, %arg3: memref<1x128x128xf32, #tpu.memory_space<vmem>>, %arg4: memref<1x8x128xf32, #tpu.memory_space<vmem>>, %arg5: memref<8x1xf32, #tpu.memory_space<vmem>>, %arg6: memref<8x1xf32, #tpu.memory_space<vmem>>) attributes {dimension_semantics = [#tpu.dimension_semantics<parallel>, #tpu.dimension_semantics<arbitrary>], iteration_bounds = array<i64: 2, 1>, scalar_prefetch = 0 : i64, scratch_operands = 2 : i64, tpu.core_type = #tpu.core_type<tc>, window_params = [{pipeline_mode = #tpu.pipeline_mode<synchronous>, transform_indices = @transform_0, window_bounds = array<i64: 8, 128>}, {transform_indices = @transform_1, window_bounds = array<i64: 1, 128, 128>}, {transform_indices = @transform_2, window_bounds = array<i64: 1, 8, 128>}]} {
    %c0_i32 = arith.constant 0 : i32
    %0 = arith.cmpi eq, %arg1, %c0_i32 : i32
    %1 = arith.extui %0 : i1 to i32
    %c0_i32_0 = arith.constant 0 : i32
    %2 = arith.cmpi ne, %1, %c0_i32_0 : i32
    scf.if %2 {
      %cst_19 = arith.constant -1.000000e+30 : f32
      %36 = vector.broadcast %cst_19 : f32 to vector<8x1xf32>
      %c0_20 = arith.constant 0 : index
      %c0_21 = arith.constant 0 : index
      %37 = vector.load %arg5[%c0_20, %c0_21] : memref<8x1xf32, #tpu.memory_space<vmem>>, vector<8x1xf32>
      tpu.vector_store %arg5[%c0_20, %c0_21], %36 {strides = array<i32>} : memref<8x1xf32, #tpu.memory_space<vmem>>, vector<8x1xf32>,
      %cst_22 = arith.constant 0.000000e+00 : f32
      %38 = vector.broadcast %cst_22 : f32 to vector<8x1xf32>
      %c0_23 = arith.constant 0 : index
      %c0_24 = arith.constant 0 : index
      %39 = vector.load %arg6[%c0_23, %c0_24] : memref<8x1xf32, #tpu.memory_space<vmem>>, vector<8x1xf32>
      tpu.vector_store %arg6[%c0_23, %c0_24], %38 {strides = array<i32>} : memref<8x1xf32, #tpu.memory_space<vmem>>, vector<8x1xf32>,
    } else {
    }
    %c0 = arith.constant 0 : index
    %c0_1 = arith.constant 0 : index
    %3 = vector.load %arg2[%c0, %c0_1] : memref<8x128xf32, #tpu.memory_space<vmem>>, vector<8x128xf32>
    %c0_2 = arith.constant 0 : index
    %c0_3 = arith.constant 0 : index
    %c0_4 = arith.constant 0 : index
    %4 = vector.load %arg3[%c0_2, %c0_3, %c0_4] : memref<1x128x128xf32, #tpu.memory_space<vmem>>, vector<1x128x128xf32>
    %5 = vector.shape_cast %4 : vector<1x128x128xf32> to vector<128x128xf32>
    %cst = arith.constant dense<0.000000e+00> : vector<8x128xf32>
    %6 = tpu.matmul %3, %5, %cst {dimension_numbers = #tpu.dot_dimension_numbers<[1], [0], [0], [1], [0, 0, 1, 1], [], []>} : vector<8x128xf32>, vector<128x128xf32>, vector<8x128xf32> -> vector<8x128xf32>
    %cst_5 = arith.constant 2.000000e+01 : f32
    %7 = vector.broadcast %cst_5 : f32 to vector<8x128xf32>
    %8 = arith.mulf %6, %7 : vector<8x128xf32>
    %9 = tpu.iota {dimensions = array<i32: 1>} : vector<8x128xi32>
    %c128_i32 = arith.constant 128 : i32
    %10 = arith.muli %arg1, %c128_i32 : i32
    %11 = vector.broadcast %10 : i32 to vector<8x128xi32>
    %12 = arith.addi %9, %11 : vector<8x128xi32>
    %c8_i32 = arith.constant 8 : i32
    %13 = vector.broadcast %c8_i32 : i32 to vector<8x128xi32>
    %14 = arith.cmpi slt, %12, %13 : vector<8x128xi32>
    %cst_6 = arith.constant -1.000000e+30 : f32
    %15 = vector.broadcast %cst_6 : f32 to vector<8x128xf32>
    %16 = arith.select %14, %8, %15 : vector<8x128xi1>, vector<8x128xf32>
    %c0_7 = arith.constant 0 : index
    %c0_8 = arith.constant 0 : index
    %17 = vector.load %arg5[%c0_7, %c0_8] : memref<8x1xf32, #tpu.memory_space<vmem>>, vector<8x1xf32>
    %cst_9 = arith.constant dense<0xFF800000> : vector<8xf32>
    %18 = vector.multi_reduction <maximumf>, %16, %cst_9 [1] : vector<8x128xf32> to vector<8xf32>
    %19 = vector.shape_cast %18 : vector<8xf32> to vector<8x1xf32>
    %20 = arith.maximumf %17, %19 : vector<8x1xf32>
    %c0_10 = arith.constant 0 : index
    %c0_11 = arith.constant 0 : index
    %21 = vector.load %arg6[%c0_10, %c0_11] : memref<8x1xf32, #tpu.memory_space<vmem>>, vector<8x1xf32>
    %22 = arith.subf %17, %20 : vector<8x1xf32>
    %23 = math.exp %22 : vector<8x1xf32>
    %24 = arith.mulf %21, %23 : vector<8x1xf32>
    %25 = vector.broadcast %20 : vector<8x1xf32> to vector<8x128xf32>
    %26 = arith.subf %16, %25 : vector<8x128xf32>
    %27 = math.exp %26 : vector<8x128xf32>
    %cst_12 = arith.constant dense<0.000000e+00> : vector<8xf32>
    %28 = vector.multi_reduction <add>, %27, %cst_12 [1] : vector<8x128xf32> to vector<8xf32>
    %29 = vector.shape_cast %28 : vector<8xf32> to vector<8x1xf32>
    %30 = arith.addf %24, %29 : vector<8x1xf32>
    %c0_13 = arith.constant 0 : index
    %c0_14 = arith.constant 0 : index
    %31 = vector.load %arg6[%c0_13, %c0_14] : memref<8x1xf32, #tpu.memory_space<vmem>>, vector<8x1xf32>
    tpu.vector_store %arg6[%c0_13, %c0_14], %30 {strides = array<i32>} : memref<8x1xf32, #tpu.memory_space<vmem>>, vector<8x1xf32>,
    %c0_15 = arith.constant 0 : index
    %c0_16 = arith.constant 0 : index
    %32 = vector.load %arg5[%c0_15, %c0_16] : memref<8x1xf32, #tpu.memory_space<vmem>>, vector<8x1xf32>
    tpu.vector_store %arg5[%c0_15, %c0_16], %20 {strides = array<i32>} : memref<8x1xf32, #tpu.memory_space<vmem>>, vector<8x1xf32>,
    %c0_i32_17 = arith.constant 0 : i32
    %33 = arith.cmpi eq, %arg1, %c0_i32_17 : i32
    %34 = arith.extui %33 : i1 to i32
    %c0_i32_18 = arith.constant 0 : i32
    %35 = arith.cmpi ne, %34, %c0_i32_18 : i32
    scf.if %35 {
      %c0_19 = arith.constant 0 : index
      %c0_20 = arith.constant 0 : index
      %36 = vector.load %arg5[%c0_19, %c0_20] : memref<8x1xf32, #tpu.memory_space<vmem>>, vector<8x1xf32>
      %c0_21 = arith.constant 0 : index
      %c0_22 = arith.constant 0 : index
      %37 = vector.load %arg6[%c0_21, %c0_22] : memref<8x1xf32, #tpu.memory_space<vmem>>, vector<8x1xf32>
      %38 = math.log %37 : vector<8x1xf32>
      %39 = arith.addf %36, %38 : vector<8x1xf32>
      %40 = vector.shape_cast %39 : vector<8x1xf32> to vector<8x1xf32>
      %41 = vector.broadcast %40 : vector<8x1xf32> to vector<8x128xf32>
      %c0_23 = arith.constant 0 : index
      %c0_24 = arith.constant 0 : index
      %c0_25 = arith.constant 0 : index
      %42 = vector.load %arg4[%c0_23, %c0_24, %c0_25] : memref<1x8x128xf32, #tpu.memory_space<vmem>>, vector<1x8x128xf32>
      %43 = vector.shape_cast %42 : vector<1x8x128xf32> to vector<8x128xf32>
      %44 = vector.shape_cast %41 : vector<8x128xf32> to vector<1x8x128xf32>
      tpu.vector_store %arg4[%c0_23, %c0_24, %c0_25], %44 {strides = array<i32>} : memref<1x8x128xf32, #tpu.memory_space<vmem>>, vector<1x8x128xf32>,
    } else {
    }
    return
  }
  func.func @transform_0(%arg0: i32, %arg1: i32) -> (i32, i32) {
    %c0_i32 = arith.constant 0 : i32
    %c0_i32_0 = arith.constant 0 : i32
    %c0_i32_1 = arith.constant 0 : i32
    return %c0_i32, %c0_i32_0 : i32, i32
  }
  func.func @transform_1(%arg0: i32, %arg1: i32) -> (i32, i32, i32) {
    %c0_i32 = arith.constant 0 : i32
    %c0_i32_0 = arith.constant 0 : i32
    return %arg0, %c0_i32, %arg1 : i32, i32, i32
  }
  func.func @transform_2(%arg0: i32, %arg1: i32) -> (i32, i32, i32) {
    %c0_i32 = arith.constant 0 : i32
    %c0_i32_0 = arith.constant 0 : i32
    %c0_i32_1 = arith.constant 0 : i32
    return %arg0, %c0_i32, %c0_i32_0 : i32, i32, i32
  }
}

</mosaic_0001>

<llo_original>
// kernel: tpu_custom_call.1
$region0: #{tpu_custom_call.1}
  #allocation0 [shape = 'u32[]', space=smem, size = 0x4, offset = 0x4, fixed_abs, tag = 'smem constant byte address 0x4 - core index']
  #allocation1 [shape = 'u32[144,128]{1,0:T(1,128)}', space=vmem, size = 0x12000, scoped, tag = 'internal scratch']
  #allocation2 [shape = 'f32[8,1]{1,0:T(8,128)}', space=vmem, size = 0x1000, scoped, tag = 'scratch operand']
  #allocation3 [shape = 'f32[8,1]{1,0:T(8,128)}', space=vmem, size = 0x1000, scoped, tag = 'scratch operand']
  %s0 = inlined_call_operand.hbm [shape: f32[8,128], index: 0, kind: input, shape index: {}]
  %s1 = inlined_call_operand.hbm [shape: f32[2,128,128], index: 1, kind: input, shape index: {}]
  %s2 = inlined_call_operand.hbm [shape: f32[2,8,128], index: 2, kind: output, shape index: {}]
  %s3 = sld [smem:[#allocation0]]
  $region57: #{tpu_custom_call.1} parent=0
    _
  %s5 = ssub.s32 1, %s3
  %s6 = scalar_select 0, %s5, %s3
  $region1: #{tpu_custom_call.1} parent=0
    #allocation4 [shape = 'u8[4096]{0}', space=vmem, size = 0x1000, scoped, tag = 'input window, operand 0, single buffered']
    #allocation5 [shape = 's32[2]{0}', space=sflag, size = 0x8, scoped, tag = 'scoped memory for tpu_custom_call.1']
    #allocation6 [shape = 's32[2]{0}', space=sflag, size = 0x8, scoped, tag = 'scoped memory for tpu_custom_call.1']
    #allocation7 [shape = 'u8[131072]{0}', space=vmem, size = 0x20000, scoped, tag = 'input window, operand 1']
    #allocation8 [shape = 's32[2]{0}', space=sflag, size = 0x8, scoped, tag = 'scoped memory for tpu_custom_call.1']
    #allocation9 [shape = 'u8[8192]{0}', space=vmem, size = 0x2000, scoped, tag = 'output window, operand 0']
    %7 = vsyncpa [#allocation5], 0
    %8 = vsyncpa [#allocation8], 0
    %s9 = scalar_lea.sflag [#allocation8], 1
    %10 = vsyncpa %s9, 0
    %11 = vsyncpa [#allocation6], 0
    %s12 = scalar_lea.sflag [#allocation6], 1
    %13 = vsyncpa %s12, 0
    loop: start=0, step=1, limit=4
    $region2: #{tpu_custom_call.1} parent=1 // loop_pre_header
      _
    $region3: #{tpu_custom_call.1} parent=1 // loop_header
      %s15 = sphi 0, %s19
      %p16 = scmp.ge.s32.totalorder %s15, 4
      %s22 = sphi 0, %s34
      %s23 = sphi 0, %s30
      %s24 = sphi 0, %s22
      %s25 = sphi 0, %s23
      %s26 = sphi 0, %s24
      %s27 = sphi 0, %s25
      %s35 = sphi 0, %s35
      %s37 = sphi 0, %s35
      %s38 = sphi 0, %s37
      %s52 = sphi 0, %s38
      %s60 = sphi 0, %s62
      %s63 = sphi 0, %s60
      %s64 = sphi 0, %s63
      %s80 = sphi 0, %s64
      %s86 = sphi 0, %s88
      %s89 = sphi 0, %s86
      %s90 = sphi 0, %s89
      %s106 = sphi 0, %s90
    $region4: #{tpu_custom_call.1} parent=1 // loop_header_branch
      %18 = sbr.rel (%p16) target = $region8
    $region5: #{tpu_custom_call.1} parent=1 // loop_body
      %s20 = ssub.s32 %s15, 1
      %s21 = ssub.s32 %s15, 2
      %s28 = sadd.s32 1, %s23
      %p29 = scmp.ge.s32.totalorder %s28, 1
      %s30 = scalar_select %p29, 0, %s28
      %s31 = sadd.s32 1, %s22
      %s32 = scalar_select %p29, %s31, %s22
      %p33 = scmp.ge.s32.totalorder %s32, 2
      %s34 = scalar_select %p33, 0, %s32
      %s36 = sadd.s32 %s35, 1
      %p39 = scmp.eq.s32.totalorder %s15, 1
      %p40 = scmp.ne.s32.totalorder %s35, %s37
      %p41 = scmp.eq.s32.totalorder %s15, 0
      %p42 = por %p40, %p41
      %p43 = scmp.ne.s32.totalorder %s35, %s37
      %p44 = scmp.eq.s32.totalorder %s20, 1
      %p45 = por %p43, %p44
      %p46 = scmp.ne.s32.totalorder %s37, %s38
      %p47 = scmp.eq.s32.totalorder %s20, 0
      %p48 = por %p46, %p47
      %p49 = scmp.ne.s32.totalorder %s37, %s38
      %p50 = scmp.eq.s32.totalorder %s21, 1
      %p51 = por %p49, %p50
      %p53 = scmp.ne.s32.totalorder %s38, %s52
      %p54 = scmp.eq.s32.totalorder %s21, 0
      %p55 = por %p53, %p54
      %s56 = ssub.s32 %s22, %s34
      %s57 = ssub.s32 %s23, %s30
      %s58 = sor.u32 %s56, %s57
      %p59 = scmp.eq.s32.totalorder %s58, 0
      %s61 = sadd.s32 %s60, 1
      %s62 = scalar_select %p59, %s60, %s61
      %p65 = pneg %p59
      %p66 = scmp.eq.s32.totalorder %s15, 1
      %p67 = por %p65, %p66
      %p68 = scmp.ne.s32.totalorder %s60, %s63
      %p69 = scmp.eq.s32.totalorder %s15, 0
      %p70 = por %p68, %p69
      %p71 = scmp.ne.s32.totalorder %s60, %s63
      %p72 = scmp.eq.s32.totalorder %s20, 1
      %p73 = por %p71, %p72
      %p74 = scmp.ne.s32.totalorder %s63, %s64
      %p75 = scmp.eq.s32.totalorder %s20, 0
      %p76 = por %p74, %p75
      %p77 = scmp.ne.s32.totalorder %s63, %s64
      %p78 = scmp.eq.s32.totalorder %s21, 1
      %p79 = por %p77, %p78
      %p81 = scmp.ne.s32.totalorder %s64, %s80
      %p82 = scmp.eq.s32.totalorder %s21, 0
      %p83 = por %p81, %p82
      %s84 = ssub.s32 %s22, %s34
      %p85 = scmp.eq.s32.totalorder %s84, 0
      %s87 = sadd.s32 %s86, 1
      %s88 = scalar_select %p85, %s86, %s87
      %p91 = pneg %p85
      %p92 = scmp.eq.s32.totalorder %s15, 1
      %p93 = por %p91, %p92
      %p94 = scmp.ne.s32.totalorder %s86, %s89
      %p95 = scmp.eq.s32.totalorder %s15, 0
      %p96 = por %p94, %p95
      %p97 = scmp.ne.s32.totalorder %s86, %s89
      %p98 = scmp.eq.s32.totalorder %s20, 1
      %p99 = por %p97, %p98
      %p100 = scmp.ne.s32.totalorder %s89, %s90
      %p101 = scmp.eq.s32.totalorder %s20, 0
      %p102 = por %p100, %p101
      %p103 = scmp.ne.s32.totalorder %s89, %s90
      %p104 = scmp.eq.s32.totalorder %s21, 1
      %p105 = por %p103, %p104
      %p107 = scmp.ne.s32.totalorder %s90, %s106
      %p108 = scmp.eq.s32.totalorder %s21, 0
      %p109 = por %p107, %p108
      %p110 = scmp.le.s32.totalorder 1, %s15
      %p111 = scmp.lt.s32.totalorder %s15, 3
      %p112 = pnand %p110, %p111
      %p113 = pneg %p112
      // Predicated region
      $region9: #{tpu_custom_call.1} parent=5 // pred_check
        _
      $region10: #{tpu_custom_call.1} parent=5 // pred_check_branch
        %115 = sbr.rel (%p112) target = $region12
      $region11: #{tpu_custom_call.1} parent=5 // pred_region
        %s116 = ssub.s32 %s15, 1
        // Predicated region
        $region13: #{tpu_custom_call.1} parent=11 // pred_check
          %p117 = pneg %p48
        $region14: #{tpu_custom_call.1} parent=11 // pred_check_branch
          %119 = sbr.rel (%p117) target = $region16
        $region15: #{tpu_custom_call.1} parent=11 // pred_region
          %s121 = ssub.s32 128, 128
          %122 = vsyncadd [#allocation5], %s121
          %s124 = sshll.u32 [#allocation4], 4
          %s125 = int_to_ptr.vmem [resolvable:$true] %s124
          %127 = dma.hbm_to_vmem [thread:$0]  %s0, 128, %s125, [#allocation5]
        $region16: #{tpu_custom_call.1} parent=11 // pred_fallthru
          _
      $region12: #{tpu_custom_call.1} parent=5 // pred_fallthru
        _
      %p128 = scmp.lt.s32.totalorder %s15, 2
      // Predicated region
      $region17: #{tpu_custom_call.1} parent=5 // pred_check
        %p129 = pneg %p128
      $region18: #{tpu_custom_call.1} parent=5 // pred_check_branch
        %131 = sbr.rel (%p129) target = $region20
      $region19: #{tpu_custom_call.1} parent=5 // pred_region
        // Predicated region
        $region21: #{tpu_custom_call.1} parent=19 // pred_check
          %p132 = pneg %p70
        $region22: #{tpu_custom_call.1} parent=19 // pred_check_branch
          %134 = sbr.rel (%p132) target = $region24
        $region23: #{tpu_custom_call.1} parent=19 // pred_region
          %s135 = sand.u32 %s60, 1
          %s136 = scalar_lea.sflag [#allocation8], %s135
          %s137 = sand.u32 %s60, 1
          %s138 = smul.addr %s137, 128
          %s139 = scalar_lea.vmem [#allocation7], %s138
          %s141 = ssub.s32 2048, 2048
          %142 = vsyncadd %s136, %s141
          %s143 = smul.addr %s22, 16
          %s144 = sadd.s32 %s23, %s143
          %s145 = smul.addr %s144, 128
          %s146 = scalar_lea.hbm %s1, %s145
          %s147 = sshll.u32 %s139, 4
          %s148 = int_to_ptr.vmem [resolvable:$true] %s147
          %153 = dma.hbm_to_vmem [thread:$0]  %s146, 2048, %s148, %s136, 128, 128, 8
        $region24: #{tpu_custom_call.1} parent=19 // pred_fallthru
          _
      $region20: #{tpu_custom_call.1} parent=5 // pred_fallthru
        _
      %p154 = scmp.le.s32.totalorder 1, %s15
      %p155 = scmp.lt.s32.totalorder %s15, 3
      %p156 = pnand %p154, %p155
      %p157 = pneg %p156
      // Predicated region
      $region25: #{tpu_custom_call.1} parent=5 // pred_check
        _
      $region26: #{tpu_custom_call.1} parent=5 // pred_check_branch
        %159 = sbr.rel (%p156) target = $region28
      $region27: #{tpu_custom_call.1} parent=5 // pred_region
        %s160 = ssub.s32 %s15, 1
        // Predicated region
        $region29: #{tpu_custom_call.1} parent=27 // pred_check
          %p161 = pneg %p48
        $region30: #{tpu_custom_call.1} parent=27 // pred_check_branch
          %163 = sbr.rel (%p161) target = $region32
        $region31: #{tpu_custom_call.1} parent=27 // pred_region
          %164 = dma.done [#allocation5], 128
        $region32: #{tpu_custom_call.1} parent=27 // pred_fallthru
          _
        %s165 = sand.u32 %s63, 1
        %s166 = scalar_lea.sflag [#allocation8], %s165
        %s167 = sand.u32 %s63, 1
        %s168 = smul.addr %s167, 128
        %s169 = scalar_lea.vmem [#allocation7], %s168
        // Predicated region
        $region33: #{tpu_custom_call.1} parent=27 // pred_check
          %p170 = pneg %p76
        $region34: #{tpu_custom_call.1} parent=27 // pred_check_branch
          %172 = sbr.rel (%p170) target = $region36
        $region35: #{tpu_custom_call.1} parent=27 // pred_region
          %173 = dma.done %s166, 2048
        $region36: #{tpu_custom_call.1} parent=27 // pred_fallthru
          _
        %p174 = pneg %p48
        %p175 = pneg %p45
        %s176 = sand.u32 %s63, 1
        %s177 = scalar_lea.sflag [#allocation8], %s176
        %s178 = sand.u32 %s63, 1
        %s179 = smul.addr %s178, 128
        %s180 = scalar_lea.vmem [#allocation7], %s179
        %p181 = pneg %p76
        %p182 = pneg %p73
        %p183 = pneg %p102
        %p184 = pneg %p99
        %s185 = sand.u32 %s89, 1
        %s186 = scalar_lea.sflag [#allocation6], %s185
        %s187 = sand.u32 %s89, 1
        %s188 = smul.addr %s187, 8
        %s189 = scalar_lea.vmem [#allocation9], %s188
        %p190 = scmp.eq.s32.totalorder %s25, 0
        // Predicated region
        $region37: #{tpu_custom_call.1} parent=27 // pred_check
          %p191 = pneg %p190
        $region38: #{tpu_custom_call.1} parent=27 // pred_check_branch
          %193 = sbr.rel (%p191) target = $region40
        $region39: #{tpu_custom_call.1} parent=27 // pred_region
          %vm194 = vcmask 7168
          %195 = vst.msk [vmem:[#allocation2] sm:$0xff] %vm194, -1e+30
          %196 = vst.msk [vmem:[#allocation3] sm:$0xff] %vm194, 0.0
        $region40: #{tpu_custom_call.1} parent=27 // pred_fallthru
          _
        %v197 = vld [vmem:[#allocation4] sm:$0xff]
        %v198 = vld [vmem:[%s169] sm:$0xff]
        %v199 = vld [vmem:[%s169 + $0x8] sm:$0xff]
        %v200 = vld [vmem:[%s169 + $0x10] sm:$0xff]
        %v201 = vld [vmem:[%s169 + $0x18] sm:$0xff]
        %v202 = vld [vmem:[%s169 + $0x20] sm:$0xff]
        %v203 = vld [vmem:[%s169 + $0x28] sm:$0xff]
        %v204 = vld [vmem:[%s169 + $0x30] sm:$0xff]
        %v205 = vld [vmem:[%s169 + $0x38] sm:$0xff]
        %v206 = vld [vmem:[%s169 + $0x40] sm:$0xff]
        %v207 = vld [vmem:[%s169 + $0x48] sm:$0xff]
        %v208 = vld [vmem:[%s169 + $0x50] sm:$0xff]
        %v209 = vld [vmem:[%s169 + $0x58] sm:$0xff]
        %v210 = vld [vmem:[%s169 + $0x60] sm:$0xff]
        %v211 = vld [vmem:[%s169 + $0x68] sm:$0xff]
        %v212 = vld [vmem:[%s169 + $0x70] sm:$0xff]
        %v213 = vld [vmem:[%s169 + $0x78] sm:$0xff]
        %214 = vmatprep.subr.mxu0 0.0
        %215 = vmatpush1.msra.mxu0 %v213
        %216 = vmatprep.subr.mxu0 0.0
        %217 = vmatpush1.msra.mxu0 %v212
        %218 = vmatprep.subr.mxu0 0.0
        %219 = vmatpush1.msra.mxu0 %v211
        %220 = vmatprep.subr.mxu0 0.0
        %221 = vmatpush1.msra.mxu0 %v210
        %222 = vmatprep.subr.mxu0 0.0
        %223 = vmatpush1.msra.mxu0 %v209
        %224 = vmatprep.subr.mxu0 0.0
        %225 = vmatpush1.msra.mxu0 %v208
        %226 = vmatprep.subr.mxu0 0.0
        %227 = vmatpush1.msra.mxu0 %v207
        %228 = vmatprep.subr.mxu0 0.0
        %229 = vmatpush1.msra.mxu0 %v206
        %230 = vmatprep.subr.mxu0 0.0
        %231 = vmatpush1.msra.mxu0 %v205
        %232 = vmatprep.subr.mxu0 0.0
        %233 = vmatpush1.msra.mxu0 %v204
        %234 = vmatprep.subr.mxu0 0.0
        %235 = vmatpush1.msra.mxu0 %v203
        %236 = vmatprep.subr.mxu0 0.0
        %237 = vmatpush1.msra.mxu0 %v202
        %238 = vmatprep.subr.mxu0 0.0
        %239 = vmatpush1.msra.mxu0 %v201
        %240 = vmatprep.subr.mxu0 0.0
        %241 = vmatpush1.msra.mxu0 %v200
        %242 = vmatprep.subr.mxu0 0.0
        %243 = vmatpush1.msra.mxu0 %v199
        %244 = vmatprep.subr.mxu0 0.0
        %245 = vmatpush1.msra.mxu0 %v198
        %246 = vmatprep.subr.mxu0 0.0
        %247 = vmatpush2.msra.mxu0 0.0
        %248 = vmatprep.subr.mxu0 0.0
        %249 = vmatpush2.msra.mxu0 0.0
        %250 = vmatprep.subr.mxu0 0.0
        %251 = vmatpush2.msra.mxu0 0.0
        %252 = vmatprep.subr.mxu0 0.0
        %253 = vmatpush2.msra.mxu0 0.0
        %254 = vmatprep.subr.mxu0 0.0
        %255 = vmatpush2.msra.mxu0 0.0
        %256 = vmatprep.subr.mxu0 0.0
        %257 = vmatpush2.msra.mxu0 0.0
        %258 = vmatprep.subr.mxu0 0.0
        %259 = vmatpush2.msra.mxu0 0.0
        %260 = vmatprep.subr.mxu0 0.0
        %261 = vmatpush2.msra.mxu0 0.0
        %262 = vmatprep.subr.mxu0 0.0
        %263 = vmatpush2.msra.mxu0 0.0
        %264 = vmatprep.subr.mxu0 0.0
        %265 = vmatpush2.msra.mxu0 0.0
        %266 = vmatprep.subr.mxu0 0.0
        %267 = vmatpush2.msra.mxu0 0.0
        %268 = vmatprep.subr.mxu0 0.0
        %269 = vmatpush2.msra.mxu0 0.0
        %270 = vmatprep.subr.mxu0 0.0
        %271 = vmatpush2.msra.mxu0 0.0
        %272 = vmatprep.subr.mxu0 0.0
        %273 = vmatpush2.msra.mxu0 0.0
        %274 = vmatprep.subr.mxu0 0.0
        %275 = vmatpush2.msra.mxu0 0.0
        %276 = vmatprep.subr.mxu0 0.0
        %277 = vmatpush2.msra.mxu0 0.0
        %278 = vmatprep.mubr.f32.mxu0 0.0
        %279 = vmatmul.mubr.f32.gmra.mxu0 %v197
        %v280 = vpop.f32.mrf.mxu0
        %v281 = vadd.f32 0.0, %v280
        %v282 = vpop.f32.mrf.mxu0
        %283 = vdwg.mxu0
        %v284 = vmul.f32 %v281, 20.0
        %v285 = vlaneseq
        %v286 = vand.u32 %v285, 127
        %s287 = smul.u32 %s25, 128
        %v288 = vstv %s287
        %v289 = vadd.s32 %v286, %v288
        %vm290 = vcmp.lt.s32.totalorder %v289, 8
        %v291 = vsel %vm290, %v284, -1e+30
        %v292 = vld [vmem:[#allocation2] sm:$0xff]
        %293 = vmax.xlane.f32.xlu0 %v291
        %v294 = vpop.xlane.xlu0 %293
        %v295 = vmax.f32 %v292, %v294
        %v296 = vld [vmem:[#allocation3] sm:$0xff]
        %v297 = vsub.f32 %v292, %v295
        %v298 = vmul.f32 %v297, 1.442695
        %v299 = vpow.pop %v298
        %v300 = vmul.f32 %v296, %v299
        %302 = vset.pattern.permute.xlu0 0
        %303 = vperm.xlu0 %302, %v295
        %v304 = vpop.permute.xlu0 %303
        %v306 = vsub.f32 %v291, %v304
        %v307 = vmul.f32 %v306, 1.442695
        %v308 = vpow.pop %v307
        %309 = vadd.xlane.f32.xlu0 %v308
        %v310 = vpop.xlane.xlu0 %309
        %v311 = vadd.f32 %v300, %v310
        %vm312 = vcmask 7168
        %313 = vst.msk [vmem:[#allocation3] sm:$0xff] %vm312, %v311
        %314 = vst.msk [vmem:[#allocation2] sm:$0xff] %vm312, %v295
        // Predicated region
        $region41: #{tpu_custom_call.1} parent=27 // pred_check
          %p315 = pneg %p190
        $region42: #{tpu_custom_call.1} parent=27 // pred_check_branch
          %317 = sbr.rel (%p315) target = $region44
        $region43: #{tpu_custom_call.1} parent=27 // pred_region
          %v318 = vld [vmem:[#allocation2] sm:$0xff]
          %v319 = vld [vmem:[#allocation3] sm:$0xff]
          %v320 = vlog2.pop %v319
          %v321 = vmul.f32 %v320, 0.6931472
          %v322 = vadd.f32 %v318, %v321
          %324 = vset.pattern.permute.xlu0 0
          %325 = vperm.xlu0 %324, %v322
          %v326 = vpop.permute.xlu0 %325
          %328 = vst [vmem:[%s189] sm:$0xff] %v326
        $region44: #{tpu_custom_call.1} parent=27 // pred_fallthru
          _
        %s329 = sand.u32 %s89, 1
        %s330 = scalar_lea.sflag [#allocation6], %s329
        %s331 = sand.u32 %s89, 1
        %s332 = smul.addr %s331, 8
        %s333 = scalar_lea.vmem [#allocation9], %s332
        // Predicated region
        $region45: #{tpu_custom_call.1} parent=27 // pred_check
          %p334 = pneg %p99
        $region46: #{tpu_custom_call.1} parent=27 // pred_check_branch
          %336 = sbr.rel (%p334) target = $region48
        $region47: #{tpu_custom_call.1} parent=27 // pred_region
          %s338 = ssub.s32 128, 128
          %339 = vsyncadd %s330, %s338
          %s340 = smul.addr %s24, 128
          %s341 = scalar_lea.hbm %s2, %s340
          %s343 = sshll.u32 %s333, 4
          %s344 = int_to_ptr.vmem [resolvable:$true] %s343
          %346 = dma.vmem_to_hbm [thread:$0]  %s344, 128, %s341, %s330
        $region48: #{tpu_custom_call.1} parent=27 // pred_fallthru
          _
      $region28: #{tpu_custom_call.1} parent=5 // pred_fallthru
        _
      %p347 = scmp.le.s32.totalorder 2, %s15
      // Predicated region
      $region49: #{tpu_custom_call.1} parent=5 // pred_check
        %p348 = pneg %p347
      $region50: #{tpu_custom_call.1} parent=5 // pred_check_branch
        %350 = sbr.rel (%p348) target = $region52
      $region51: #{tpu_custom_call.1} parent=5 // pred_region
        %s351 = ssub.s32 %s15, 2
        // Predicated region
        $region53: #{tpu_custom_call.1} parent=51 // pred_check
          %p352 = pneg %p105
        $region54: #{tpu_custom_call.1} parent=51 // pred_check_branch
          %354 = sbr.rel (%p352) target = $region56
        $region55: #{tpu_custom_call.1} parent=51 // pred_region
          %s355 = sand.u32 %s90, 1
          %s356 = scalar_lea.sflag [#allocation6], %s355
          %s357 = sand.u32 %s90, 1
          %s358 = smul.addr %s357, 8
          %s359 = scalar_lea.vmem [#allocation9], %s358
          %360 = dma.done %s356, 128
        $region56: #{tpu_custom_call.1} parent=51 // pred_fallthru
          _
      $region52: #{tpu_custom_call.1} parent=5 // pred_fallthru
        _
    $region6: #{tpu_custom_call.1} parent=1 // loop_footer
      %s19 = sadd.s32 1, %s15
    $region7: #{tpu_custom_call.1} parent=1 // loop_footer_branch
      %14 = sbr.rel target = $region3
    $region8: #{tpu_custom_call.1} parent=1 // loop_exit
      _
    %361 = vsyncpa [#allocation5], 1
    %s362 = scalar_lea.sflag [#allocation5], 1
    %363 = vsyncpa %s362, 1
    %364 = vsyncpa [#allocation8], 1
    %s365 = scalar_lea.sflag [#allocation8], 1
    %366 = vsyncpa %s365, 1
    %367 = vsyncpa [#allocation6], 1
    %s368 = scalar_lea.sflag [#allocation6], 1
    %369 = vsyncpa %s368, 1

</llo_original>
